<compile_context>
chip_gen: v6e
topology: v6e:2x2x1
jax: 0.10.0
libtpu: 0.0.40
codegen_flags: <defaults>
</compile_context>

<pallas_src>
import jax
import jax.numpy as jnp
import numpy as np
from jax.experimental import pallas as pl
from jax.experimental.pallas import tpu as pltpu

BN_EPS = 1e-5


def _make_transition_kernel(c_in):
    def kernel(x_ref, scale_ref, bias_ref, w_ref, o_ref):
        # x_ref block: (1, 2*T, Wo, 2*Cin).  Dim 1 holds the even/odd H rows of
        # each pool window interleaved; the lane dim holds [W-even | W-odd]
        # channel groups of size Cin each.
        x = x_ref[0]                                   # (2*T, Wo, 2*Cin)
        two_t, wo, _ = x.shape
        t = two_t // 2
        c_out = w_ref.shape[1]

        xr = x.reshape(t, 2, wo, 2 * c_in)             # leading-dim split: free

        scale = scale_ref[...]                         # (1, 1, Cin) f32
        bias = bias_ref[...]                           # (1, 1, Cin) f32

        def bn_relu(p):                                # folded BN (eval) + ReLU
            return jnp.maximum(p.astype(jnp.float32) * scale + bias, 0.0)

        # Accumulate the four ReLU'd window pixels in place (one live plane).
        acc = bn_relu(xr[:, 0, :, :c_in])              # H even, W even
        acc = acc + bn_relu(xr[:, 0, :, c_in:])        # H even, W odd
        acc = acc + bn_relu(xr[:, 1, :, :c_in])        # H odd,  W even
        acc = acc + bn_relu(xr[:, 1, :, c_in:])        # H odd,  W odd

        # 1x1 conv on the *pooled* rows (0.25 pool scale folded into w).
        pooled = acc.reshape(t * wo, c_in).astype(w_ref.dtype)
        y = jnp.dot(pooled, w_ref[...], preferred_element_type=jnp.float32)
        o_ref[0] = y.reshape(t, wo, c_out).astype(o_ref.dtype)

    return kernel


def _pick_tile_ho(n_batch, ho, wo, c_in, c_out, act_bytes, out_bytes, w_bytes,
                  budget_bytes=12 << 20):
    """Largest divisor of Ho whose per-step VMEM fits the budget; prefers >=2
    total grid steps so both v7x TensorCores get work."""
    def vmem_bytes(t):
        in_blk = 2 * t * wo * (2 * c_in) * act_bytes      # (1, 2t, Wo, 2Cin)
        out_blk = t * wo * c_out * out_bytes
        fixed = c_in * c_out * w_bytes + 2 * c_in * 4     # weight + scale/bias
        temps = t * wo * (2 * c_in + c_out) * 4           # f32 acc/plane + y
        return 2 * (in_blk + out_blk + fixed) + temps     # 2-deep pipelining

    divisors = [d for d in range(ho, 0, -1) if ho % d == 0]
    fitting = [d for d in divisors if vmem_bytes(d) <= budget_bytes] or [1]
    tile = fitting[0]
    if n_batch * (ho // tile) < 2:                        # v7x megacore
        smaller = [d for d in fitting if ho // d >= 2]
        if smaller:
            tile = smaller[0]
    return tile


def transition_forward_nhwc(x_nhwc, gamma, beta, run_mean, run_var, conv_w, *,
                            matmul_dtype=jnp.bfloat16,
                            activation_dtype=jnp.bfloat16,
                            out_dtype=jnp.float32,
                            tile_ho=None,
                            input_buffering=None):
    """Core path: NHWC in, NHWC out, zero wrapper-side transposes.

    x_nhwc: (N, H, W, Cin); conv_w: (Cout, Cin) or (Cout, Cin, 1, 1).
    Returns (N, H//2, W//2, Cout) in out_dtype.
    """
    if conv_w.ndim == 4:                                  # PyTorch 1x1 layout
        conv_w = conv_w[:, :, 0, 0]
    n, h, w, c_in = x_nhwc.shape
    c_out = conv_w.shape[0]
    ho, wo = h // 2, w // 2
    assert ho >= 1 and wo >= 1, "spatial dims too small for AvgPool2d(2,2)"

    # PyTorch AvgPool2d(2,2) silently drops a trailing odd row/column.
    if h % 2 or w % 2:
        x_nhwc = x_nhwc[:, : 2 * ho, : 2 * wo, :]

    if activation_dtype is not None and x_nhwc.dtype != activation_dtype:
        x_nhwc = x_nhwc.astype(activation_dtype)

    # Fold eval-mode BatchNorm into per-channel scale / bias (f32 VPU math).
    scale = (gamma * jax.lax.rsqrt(run_var + BN_EPS)).astype(jnp.float32)
    bias = (beta - run_mean * scale).astype(jnp.float32)
    scale3 = scale.reshape(1, 1, c_in)
    bias3 = bias.reshape(1, 1, c_in)

    # 1x1 conv weight as (Cin, Cout) with the 0.25 pool scale folded in (exact).
    w_mat = (jnp.transpose(conv_w, (1, 0)) * 0.25).astype(matmul_dtype)

    # Free contiguous reshape: the two W pixels of each pool window become a
    # lane-dim split at offset Cin.
    xg = x_nhwc.reshape(n, 2 * ho, wo, 2 * c_in)

    if tile_ho is None:
        tile_ho = _pick_tile_ho(
            n, ho, wo, c_in, c_out,
            act_bytes=x_nhwc.dtype.itemsize,
            out_bytes=np.dtype(out_dtype).itemsize,
            w_bytes=np.dtype(matmul_dtype).itemsize)
    assert ho % tile_ho == 0, f"tile_ho={tile_ho} must divide Ho={ho}"

    x_spec_kwargs = {}
    if input_buffering is not None and input_buffering != 2:
        # Optional deeper pipelining for small blocks / fast-HBM parts (v7x).
        x_spec_kwargs["pipeline_mode"] = pl.Buffered(input_buffering)
    x_spec = pl.BlockSpec((1, 2 * tile_ho, wo, 2 * c_in),
                          lambda b, m: (b, m, 0, 0), **x_spec_kwargs)

    grid = (n, ho // tile_ho)

    out = pl.pallas_call(
        _make_transition_kernel(c_in),
        out_shape=jax.ShapeDtypeStruct((n, ho, wo, c_out), out_dtype),
        grid_spec=pltpu.PrefetchScalarGridSpec(
            num_scalar_prefetch=0,
            grid=grid,
            in_specs=[
                x_spec,
                pl.BlockSpec((1, 1, c_in), lambda b, m: (0, 0, 0)),
                pl.BlockSpec((1, 1, c_in), lambda b, m: (0, 0, 0)),
                pl.BlockSpec((c_in, c_out), lambda b, m: (0, 0)),
            ],
            # Output lane dim = Cout (>=128 for real DenseNet -> dense stores).
            out_specs=pl.BlockSpec((1, tile_ho, wo, c_out),
                                   lambda b, m: (b, m, 0, 0)),
        ),
        compiler_params=pltpu.CompilerParams(
            dimension_semantics=("parallel", "parallel")),
    )(xg, scale3, bias3, w_mat)
    return out


def transition_forward(x_nchw, gamma, beta, run_mean, run_var, conv_w, *,
                       matmul_dtype=jnp.bfloat16,
                       activation_dtype=jnp.bfloat16,
                       out_dtype=jnp.float32,
                       tile_ho=None,
                       input_buffering=None,
                       return_nhwc=False):
    """PyTorch-convention entry: (N, Cin, H, W) -> (N, Cout, H//2, W//2).

    Does exactly one input glue transpose (NCHW->NHWC), on the already
    down-cast activations.  Set return_nhwc=True (and out_dtype=bf16) to skip
    the output transpose when the downstream consumer is NHWC-tolerant.
    """
    if activation_dtype is not None and x_nchw.dtype != activation_dtype:
        x_nchw = x_nchw.astype(activation_dtype)       # cast BEFORE transpose
    x_nhwc = jnp.transpose(x_nchw, (0, 2, 3, 1))       # the one glue transpose
    y = transition_forward_nhwc(
        x_nhwc, gamma, beta, run_mean, run_var, conv_w,
        matmul_dtype=matmul_dtype, activation_dtype=activation_dtype,
        out_dtype=out_dtype, tile_ho=tile_ho, input_buffering=input_buffering)
    if return_nhwc:
        return y
    return jnp.transpose(y, (0, 3, 1, 2))


def transition_reference(x, gamma, beta, run_mean, run_var, conv_w):
    """Plain-JAX reference mirroring the PyTorch module (eval-mode BN)."""
    N, C_in, H, W = x.shape
    C_out = conv_w.shape[0]
    xb = (x - run_mean[None, :, None, None]) / jnp.sqrt(
        run_var[None, :, None, None] + BN_EPS)
    xb = xb * gamma[None, :, None, None] + beta[None, :, None, None]
    h = jnp.maximum(xb, 0.0)
    y = jnp.einsum('nchw,oc->nohw', h, conv_w)                      # 1x1 conv
    y = y.reshape(N, C_out, H // 2, 2, W // 2, 2).mean(axis=(3, 5))  # avgpool
    return y


if __name__ == "__main__":
    key = jax.random.PRNGKey(0)
    k_x, k_w, k_g, k_b, k_m, k_v = jax.random.split(key, 6)

    N, C_in, C_out, H, W = 2, 4, 2, 16, 16

    x = jax.random.normal(k_x, (N, C_in, H, W), dtype=jnp.float32)

    # Deterministic synthetic parameters (shapes from Transition.__init__).
    conv_w = jax.random.uniform(k_w, (C_out, C_in), dtype=jnp.float32,
                                minval=-0.5, maxval=0.5)            # bias=False
    gamma = 1.0 + 0.1 * jax.random.normal(k_g, (C_in,), dtype=jnp.float32)
    beta = 0.1 * jax.random.normal(k_b, (C_in,), dtype=jnp.float32)
    run_mean = 0.1 * jax.random.normal(k_m, (C_in,), dtype=jnp.float32)
    run_var = jax.random.uniform(k_v, (C_in,), dtype=jnp.float32,
                                 minval=0.5, maxval=1.5)

    ref = transition_reference(x, gamma, beta, run_mean, run_var, conv_w)

    # 1) strict f32 path (f32 activations + f32 MXU), auto tile.
    out_f32 = jax.block_until_ready(
        transition_forward(x, gamma, beta, run_mean, run_var, conv_w,
                           matmul_dtype=jnp.float32,
                           activation_dtype=jnp.float32))
    assert out_f32.shape == (N, C_out, H // 2, W // 2), out_f32.shape
    assert jnp.allclose(out_f32, ref, atol=1e-4, rtol=1e-4), \
        f"max err {jnp.max(jnp.abs(out_f32 - ref))}"

    # 2) strict f32 path with explicit row tiling (grid = (N, Ho//2) = (2, 4)).
    out_tiled = jax.block_until_ready(
        transition_forward(x, gamma, beta, run_mean, run_var, conv_w,
                           matmul_dtype=jnp.float32,
                           activation_dtype=jnp.float32, tile_ho=2))
    assert jnp.allclose(out_tiled, ref, atol=1e-4, rtol=1e-4), \
        f"max err {jnp.max(jnp.abs(out_tiled - ref))}"

    # 3) default fast path: bf16 activation streaming + bf16 MXU operands.
    out_bf16 = jax.block_until_ready(
        transition_forward(x, gamma, beta, run_mean, run_var, conv_w))
    assert jnp.allclose(out_bf16, ref, atol=3e-2, rtol=3e-2), \
        f"max err {jnp.max(jnp.abs(out_bf16 - ref))}"

    # 4) zero-transpose NHWC / bf16-output path for NHWC pipelines.
    x_nhwc = jnp.transpose(x, (0, 2, 3, 1)).astype(jnp.bfloat16)
    out_nhwc = jax.block_until_ready(
        transition_forward_nhwc(x_nhwc, gamma, beta, run_mean, run_var, conv_w,
                                out_dtype=jnp.bfloat16))
    ref_nhwc = jnp.transpose(ref, (0, 2, 3, 1))
    assert out_nhwc.shape == ref_nhwc.shape, out_nhwc.shape
    assert jnp.allclose(out_nhwc.astype(jnp.float32), ref_nhwc,
                        atol=5e-2, rtol=5e-2), \
        f"max err {jnp.max(jnp.abs(out_nhwc.astype(jnp.float32) - ref_nhwc))}"

    print("KERNEL_OK")
</pallas_src>

<mosaic_0001>
module attributes {stable_mosaic.version = 11 : i64} {
  func.func @kernel(%arg0: i32, %arg1: i32, %arg2: memref<1x16x8x8xf32, #tpu.memory_space<vmem>>, %arg3: memref<1x1x4xf32, #tpu.memory_space<vmem>>, %arg4: memref<1x1x4xf32, #tpu.memory_space<vmem>>, %arg5: memref<4x2xf32, #tpu.memory_space<vmem>>, %arg6: memref<1x8x8x2xf32, #tpu.memory_space<vmem>>) attributes {dimension_semantics = [#tpu.dimension_semantics<parallel>, #tpu.dimension_semantics<parallel>], iteration_bounds = array<i64: 2, 1>, scalar_prefetch = 0 : i64, scratch_operands = 0 : i64, tpu.core_type = #tpu.core_type<tc>, window_params = [{transform_indices = @transform_0, window_bounds = array<i64: 1, 16, 8, 8>}, {pipeline_mode = #tpu.pipeline_mode<synchronous>, transform_indices = @transform_1, window_bounds = array<i64: 1, 1, 4>}, {pipeline_mode = #tpu.pipeline_mode<synchronous>, transform_indices = @transform_2, window_bounds = array<i64: 1, 1, 4>}, {pipeline_mode = #tpu.pipeline_mode<synchronous>, transform_indices = @transform_3, window_bounds = array<i64: 4, 2>}, {transform_indices = @transform_4, window_bounds = array<i64: 1, 8, 8, 2>}]} {
    %c0 = arith.constant 0 : index
    %c0_0 = arith.constant 0 : index
    %c0_1 = arith.constant 0 : index
    %c0_2 = arith.constant 0 : index
    %0 = vector.load %arg2[%c0, %c0_0, %c0_1, %c0_2] : memref<1x16x8x8xf32, #tpu.memory_space<vmem>>, vector<1x16x8x8xf32>
    %1 = vector.shape_cast %0 : vector<1x16x8x8xf32> to vector<16x8x8xf32>
    %2 = vector.shape_cast %1 : vector<16x8x8xf32> to vector<8x2x8x8xf32>
    %c0_3 = arith.constant 0 : index
    %c0_4 = arith.constant 0 : index
    %c0_5 = arith.constant 0 : index
    %3 = vector.load %arg3[%c0_3, %c0_4, %c0_5] : memref<1x1x4xf32, #tpu.memory_space<vmem>>, vector<1x1x4xf32>
    %c0_6 = arith.constant 0 : index
    %c0_7 = arith.constant 0 : index
    %c0_8 = arith.constant 0 : index
    %4 = vector.load %arg4[%c0_6, %c0_7, %c0_8] : memref<1x1x4xf32, #tpu.memory_space<vmem>>, vector<1x1x4xf32>
    %5 = vector.extract_strided_slice %2 {offsets = [0, 0, 0, 0], sizes = [8, 1, 8, 4], strides = [1, 1, 1, 1]} : vector<8x2x8x8xf32> to vector<8x1x8x4xf32>
    %6 = vector.shape_cast %5 : vector<8x1x8x4xf32> to vector<8x8x4xf32>
    %7 = vector.broadcast %3 : vector<1x1x4xf32> to vector<8x8x4xf32>
    %8 = arith.mulf %6, %7 : vector<8x8x4xf32>
    %9 = vector.broadcast %4 : vector<1x1x4xf32> to vector<8x8x4xf32>
    %10 = arith.addf %8, %9 : vector<8x8x4xf32>
    %cst = arith.constant 0.000000e+00 : f32
    %11 = vector.broadcast %cst : f32 to vector<8x8x4xf32>
    %12 = arith.maximumf %10, %11 : vector<8x8x4xf32>
    %13 = vector.extract_strided_slice %2 {offsets = [0, 0, 0, 4], sizes = [8, 1, 8, 4], strides = [1, 1, 1, 1]} : vector<8x2x8x8xf32> to vector<8x1x8x4xf32>
    %14 = vector.shape_cast %13 : vector<8x1x8x4xf32> to vector<8x8x4xf32>
    %15 = vector.broadcast %3 : vector<1x1x4xf32> to vector<8x8x4xf32>
    %16 = arith.mulf %14, %15 : vector<8x8x4xf32>
    %17 = vector.broadcast %4 : vector<1x1x4xf32> to vector<8x8x4xf32>
    %18 = arith.addf %16, %17 : vector<8x8x4xf32>
    %cst_9 = arith.constant 0.000000e+00 : f32
    %19 = vector.broadcast %cst_9 : f32 to vector<8x8x4xf32>
    %20 = arith.maximumf %18, %19 : vector<8x8x4xf32>
    %21 = arith.addf %12, %20 : vector<8x8x4xf32>
    %22 = vector.extract_strided_slice %2 {offsets = [0, 1, 0, 0], sizes = [8, 1, 8, 4], strides = [1, 1, 1, 1]} : vector<8x2x8x8xf32> to vector<8x1x8x4xf32>
    %23 = vector.shape_cast %22 : vector<8x1x8x4xf32> to vector<8x8x4xf32>
    %24 = vector.broadcast %3 : vector<1x1x4xf32> to vector<8x8x4xf32>
    %25 = arith.mulf %23, %24 : vector<8x8x4xf32>
    %26 = vector.broadcast %4 : vector<1x1x4xf32> to vector<8x8x4xf32>
    %27 = arith.addf %25, %26 : vector<8x8x4xf32>
    %cst_10 = arith.constant 0.000000e+00 : f32
    %28 = vector.broadcast %cst_10 : f32 to vector<8x8x4xf32>
    %29 = arith.maximumf %27, %28 : vector<8x8x4xf32>
    %30 = arith.addf %21, %29 : vector<8x8x4xf32>
    %31 = vector.extract_strided_slice %2 {offsets = [0, 1, 0, 4], sizes = [8, 1, 8, 4], strides = [1, 1, 1, 1]} : vector<8x2x8x8xf32> to vector<8x1x8x4xf32>
    %32 = vector.shape_cast %31 : vector<8x1x8x4xf32> to vector<8x8x4xf32>
    %33 = vector.broadcast %3 : vector<1x1x4xf32> to vector<8x8x4xf32>
    %34 = arith.mulf %32, %33 : vector<8x8x4xf32>
    %35 = vector.broadcast %4 : vector<1x1x4xf32> to vector<8x8x4xf32>
    %36 = arith.addf %34, %35 : vector<8x8x4xf32>
    %cst_11 = arith.constant 0.000000e+00 : f32
    %37 = vector.broadcast %cst_11 : f32 to vector<8x8x4xf32>
    %38 = arith.maximumf %36, %37 : vector<8x8x4xf32>
    %39 = arith.addf %30, %38 : vector<8x8x4xf32>
    %40 = vector.shape_cast %39 : vector<8x8x4xf32> to vector<64x4xf32>
    %c0_12 = arith.constant 0 : index
    %c0_13 = arith.constant 0 : index
    %41 = vector.load %arg5[%c0_12, %c0_13] : memref<4x2xf32, #tpu.memory_space<vmem>>, vector<4x2xf32>
    %cst_14 = arith.constant dense<0.000000e+00> : vector<64x2xf32>
    %42 = tpu.matmul %40, %41, %cst_14 {dimension_numbers = #tpu.dot_dimension_numbers<[1], [0], [0], [1], [0, 0, 1, 1], [], []>} : vector<64x4xf32>, vector<4x2xf32>, vector<64x2xf32> -> vector<64x2xf32>
    %43 = vector.shape_cast %42 : vector<64x2xf32> to vector<8x8x2xf32>
    %c0_15 = arith.constant 0 : index
    %c0_16 = arith.constant 0 : index
    %c0_17 = arith.constant 0 : index
    %c0_18 = arith.constant 0 : index
    %44 = vector.load %arg6[%c0_15, %c0_16, %c0_17, %c0_18] : memref<1x8x8x2xf32, #tpu.memory_space<vmem>>, vector<1x8x8x2xf32>
    %45 = vector.shape_cast %44 : vector<1x8x8x2xf32> to vector<8x8x2xf32>
    %46 = vector.shape_cast %43 : vector<8x8x2xf32> to vector<1x8x8x2xf32>
    tpu.vector_store %arg6[%c0_15, %c0_16, %c0_17, %c0_18], %46 {strides = array<i32>} : memref<1x8x8x2xf32, #tpu.memory_space<vmem>>, vector<1x8x8x2xf32>,
    return
  }
  func.func @transform_0(%arg0: i32, %arg1: i32) -> (i32, i32, i32, i32) {
    %c0_i32 = arith.constant 0 : i32
    %c0_i32_0 = arith.constant 0 : i32
    %c0_i32_1 = arith.constant 0 : i32
    return %arg0, %arg1, %c0_i32, %c0_i32_0 : i32, i32, i32, i32
  }
  func.func @transform_1(%arg0: i32, %arg1: i32) -> (i32, i32, i32) {
    %c0_i32 = arith.constant 0 : i32
    %c0_i32_0 = arith.constant 0 : i32
    %c0_i32_1 = arith.constant 0 : i32
    %c0_i32_2 = arith.constant 0 : i32
    return %c0_i32, %c0_i32_0, %c0_i32_1 : i32, i32, i32
  }
  func.func @transform_2(%arg0: i32, %arg1: i32) -> (i32, i32, i32) {
    %c0_i32 = arith.constant 0 : i32
    %c0_i32_0 = arith.constant 0 : i32
    %c0_i32_1 = arith.constant 0 : i32
    %c0_i32_2 = arith.constant 0 : i32
    return %c0_i32, %c0_i32_0, %c0_i32_1 : i32, i32, i32
  }
  func.func @transform_3(%arg0: i32, %arg1: i32) -> (i32, i32) {
    %c0_i32 = arith.constant 0 : i32
    %c0_i32_0 = arith.constant 0 : i32
    %c0_i32_1 = arith.constant 0 : i32
    return %c0_i32, %c0_i32_0 : i32, i32
  }
  func.func @transform_4(%arg0: i32, %arg1: i32) -> (i32, i32, i32, i32) {
    %c0_i32 = arith.constant 0 : i32
    %c0_i32_0 = arith.constant 0 : i32
    %c0_i32_1 = arith.constant 0 : i32
    return %arg0, %arg1, %c0_i32, %c0_i32_0 : i32, i32, i32, i32
  }
}

</mosaic_0001>

<llo_original>
// kernel: tpu_custom_call.1
$region0: #{tpu_custom_call.1}
  #allocation0 [shape = 'u32[]', space=smem, size = 0x4, offset = 0x4, fixed_abs, tag = 'smem constant byte address 0x4 - core index']
  #allocation1 [shape = 'u32[144,128]{1,0:T(1,128)}', space=vmem, size = 0x12000, scoped, tag = 'internal scratch']
  %s0 = inlined_call_operand.vmem [shape: f32[2,16,8,8], index: 0, kind: input, shape index: {}]
  %s1 = inlined_call_operand.vmem [shape: f32[1,1,4], index: 1, kind: input, shape index: {}]
  %s2 = inlined_call_operand.vmem [shape: f32[1,1,4], index: 2, kind: input, shape index: {}]
  %s3 = inlined_call_operand.vmem [shape: f32[4,2], index: 3, kind: input, shape index: {}]
  %s4 = inlined_call_operand.vmem [shape: f32[2,8,8,2], index: 4, kind: output, shape index: {}]
  %s5 = sld [smem:[#allocation0]]
  $region49: #{tpu_custom_call.1} parent=0
    _
  %s7 = ssub.s32 1, %s5
  %s8 = scalar_select 0, %s7, %s5
  loop: start=0, step=1, limit=4
  $region2: #{tpu_custom_call.1} parent=0 // loop_pre_header
    _
  $region3: #{tpu_custom_call.1} parent=0 // loop_header
    %s10 = sphi 0, %s14
    %p11 = scmp.ge.s32.totalorder %s10, 4
    %s17 = sphi 0, %s29
    %s18 = sphi 0, %s25
    %s19 = sphi 0, %s17
    %s20 = sphi 0, %s18
    %s21 = sphi 0, %s19
    %s22 = sphi 0, %s20
    %s34 = sphi 0, %s36
    %s37 = sphi 0, %s34
    %s38 = sphi 0, %s37
    %s54 = sphi 0, %s38
    %s58 = sphi 0, %s58
    %s60 = sphi 0, %s58
    %s61 = sphi 0, %s60
    %s75 = sphi 0, %s61
    %s79 = sphi 0, %s79
    %s81 = sphi 0, %s79
    %s82 = sphi 0, %s81
    %s96 = sphi 0, %s82
    %s100 = sphi 0, %s100
    %s102 = sphi 0, %s100
    %s103 = sphi 0, %s102
    %s117 = sphi 0, %s103
    %s125 = sphi 0, %s127
    %s128 = sphi 0, %s125
    %s129 = sphi 0, %s128
    %s145 = sphi 0, %s129
  $region4: #{tpu_custom_call.1} parent=0 // loop_header_branch
    %13 = sbr.rel (%p11) target = $region8
  $region5: #{tpu_custom_call.1} parent=0 // loop_body
    %s15 = ssub.s32 %s10, 1
    %s16 = ssub.s32 %s10, 2
    %s23 = sadd.s32 1, %s18
    %p24 = scmp.ge.s32.totalorder %s23, 1
    %s25 = scalar_select %p24, 0, %s23
    %s26 = sadd.s32 1, %s17
    %s27 = scalar_select %p24, %s26, %s17
    %p28 = scmp.ge.s32.totalorder %s27, 2
    %s29 = scalar_select %p28, 0, %s27
    %s30 = ssub.s32 %s17, %s29
    %s31 = ssub.s32 %s18, %s25
    %s32 = sor.u32 %s30, %s31
    %p33 = scmp.eq.s32.totalorder %s32, 0
    %s35 = sadd.s32 %s34, 1
    %s36 = scalar_select %p33, %s34, %s35
    %p39 = pneg %p33
    %p40 = scmp.eq.s32.totalorder %s10, 1
    %p41 = por %p39, %p40
    %p42 = scmp.ne.s32.totalorder %s34, %s37
    %p43 = scmp.eq.s32.totalorder %s10, 0
    %p44 = por %p42, %p43
    %p45 = scmp.ne.s32.totalorder %s34, %s37
    %p46 = scmp.eq.s32.totalorder %s15, 1
    %p47 = por %p45, %p46
    %p48 = scmp.ne.s32.totalorder %s37, %s38
    %p49 = scmp.eq.s32.totalorder %s15, 0
    %p50 = por %p48, %p49
    %p51 = scmp.ne.s32.totalorder %s37, %s38
    %p52 = scmp.eq.s32.totalorder %s16, 1
    %p53 = por %p51, %p52
    %p55 = scmp.ne.s32.totalorder %s38, %s54
    %p56 = scmp.eq.s32.totalorder %s16, 0
    %p57 = por %p55, %p56
    %s59 = sadd.s32 %s58, 1
    %p62 = scmp.eq.s32.totalorder %s10, 1
    %p63 = scmp.ne.s32.totalorder %s58, %s60
    %p64 = scmp.eq.s32.totalorder %s10, 0
    %p65 = por %p63, %p64
    %p66 = scmp.ne.s32.totalorder %s58, %s60
    %p67 = scmp.eq.s32.totalorder %s15, 1
    %p68 = por %p66, %p67
    %p69 = scmp.ne.s32.totalorder %s60, %s61
    %p70 = scmp.eq.s32.totalorder %s15, 0
    %p71 = por %p69, %p70
    %p72 = scmp.ne.s32.totalorder %s60, %s61
    %p73 = scmp.eq.s32.totalorder %s16, 1
    %p74 = por %p72, %p73
    %p76 = scmp.ne.s32.totalorder %s61, %s75
    %p77 = scmp.eq.s32.totalorder %s16, 0
    %p78 = por %p76, %p77
    %s80 = sadd.s32 %s79, 1
    %p83 = scmp.eq.s32.totalorder %s10, 1
    %p84 = scmp.ne.s32.totalorder %s79, %s81
    %p85 = scmp.eq.s32.totalorder %s10, 0
    %p86 = por %p84, %p85
    %p87 = scmp.ne.s32.totalorder %s79, %s81
    %p88 = scmp.eq.s32.totalorder %s15, 1
    %p89 = por %p87, %p88
    %p90 = scmp.ne.s32.totalorder %s81, %s82
    %p91 = scmp.eq.s32.totalorder %s15, 0
    %p92 = por %p90, %p91
    %p93 = scmp.ne.s32.totalorder %s81, %s82
    %p94 = scmp.eq.s32.totalorder %s16, 1
    %p95 = por %p93, %p94
    %p97 = scmp.ne.s32.totalorder %s82, %s96
    %p98 = scmp.eq.s32.totalorder %s16, 0
    %p99 = por %p97, %p98
    %s101 = sadd.s32 %s100, 1
    %p104 = scmp.eq.s32.totalorder %s10, 1
    %p105 = scmp.ne.s32.totalorder %s100, %s102
    %p106 = scmp.eq.s32.totalorder %s10, 0
    %p107 = por %p105, %p106
    %p108 = scmp.ne.s32.totalorder %s100, %s102
    %p109 = scmp.eq.s32.totalorder %s15, 1
    %p110 = por %p108, %p109
    %p111 = scmp.ne.s32.totalorder %s102, %s103
    %p112 = scmp.eq.s32.totalorder %s15, 0
    %p113 = por %p111, %p112
    %p114 = scmp.ne.s32.totalorder %s102, %s103
    %p115 = scmp.eq.s32.totalorder %s16, 1
    %p116 = por %p114, %p115
    %p118 = scmp.ne.s32.totalorder %s103, %s117
    %p119 = scmp.eq.s32.totalorder %s16, 0
    %p120 = por %p118, %p119
    %s121 = ssub.s32 %s17, %s29
    %s122 = ssub.s32 %s18, %s25
    %s123 = sor.u32 %s121, %s122
    %p124 = scmp.eq.s32.totalorder %s123, 0
    %s126 = sadd.s32 %s125, 1
    %s127 = scalar_select %p124, %s125, %s126
    %p130 = pneg %p124
    %p131 = scmp.eq.s32.totalorder %s10, 1
    %p132 = por %p130, %p131
    %p133 = scmp.ne.s32.totalorder %s125, %s128
    %p134 = scmp.eq.s32.totalorder %s10, 0
    %p135 = por %p133, %p134
    %p136 = scmp.ne.s32.totalorder %s125, %s128
    %p137 = scmp.eq.s32.totalorder %s15, 1
    %p138 = por %p136, %p137
    %p139 = scmp.ne.s32.totalorder %s128, %s129
    %p140 = scmp.eq.s32.totalorder %s15, 0
    %p141 = por %p139, %p140
    %p142 = scmp.ne.s32.totalorder %s128, %s129
    %p143 = scmp.eq.s32.totalorder %s16, 1
    %p144 = por %p142, %p143
    %p146 = scmp.ne.s32.totalorder %s129, %s145
    %p147 = scmp.eq.s32.totalorder %s16, 0
    %p148 = por %p146, %p147
    %p149 = scmp.le.s32.totalorder 1, %s10
    %p150 = scmp.lt.s32.totalorder %s10, 3
    %p151 = pnand %p149, %p150
    %p152 = pneg %p151
    // Predicated region
    $region9: #{tpu_custom_call.1} parent=5 // pred_check
      _
    $region10: #{tpu_custom_call.1} parent=5 // pred_check_branch
      %154 = sbr.rel (%p151) target = $region12
    $region11: #{tpu_custom_call.1} parent=5 // pred_region
      %s155 = ssub.s32 %s10, 1
      // Predicated region
      $region13: #{tpu_custom_call.1} parent=11 // pred_check
        %p156 = pneg %p71
      $region14: #{tpu_custom_call.1} parent=11 // pred_check_branch
        %158 = sbr.rel (%p156) target = $region16
      $region15: #{tpu_custom_call.1} parent=11 // pred_region
        _
      $region16: #{tpu_custom_call.1} parent=11 // pred_fallthru
        _
      // Predicated region
      $region17: #{tpu_custom_call.1} parent=11 // pred_check
        %p159 = pneg %p92
      $region18: #{tpu_custom_call.1} parent=11 // pred_check_branch
        %161 = sbr.rel (%p159) target = $region20
      $region19: #{tpu_custom_call.1} parent=11 // pred_region
        _
      $region20: #{tpu_custom_call.1} parent=11 // pred_fallthru
        _
      // Predicated region
      $region21: #{tpu_custom_call.1} parent=11 // pred_check
        %p162 = pneg %p113
      $region22: #{tpu_custom_call.1} parent=11 // pred_check_branch
        %164 = sbr.rel (%p162) target = $region24
      $region23: #{tpu_custom_call.1} parent=11 // pred_region
        _
      $region24: #{tpu_custom_call.1} parent=11 // pred_fallthru
        _
    $region12: #{tpu_custom_call.1} parent=5 // pred_fallthru
      _
    %p165 = scmp.lt.s32.totalorder %s10, 2
    // Predicated region
    $region25: #{tpu_custom_call.1} parent=5 // pred_check
      %p166 = pneg %p165
    $region26: #{tpu_custom_call.1} parent=5 // pred_check_branch
      %168 = sbr.rel (%p166) target = $region28
    $region27: #{tpu_custom_call.1} parent=5 // pred_region
      // Predicated region
      $region29: #{tpu_custom_call.1} parent=27 // pred_check
        %p169 = pneg %p44
      $region30: #{tpu_custom_call.1} parent=27 // pred_check_branch
        %171 = sbr.rel (%p169) target = $region32
      $region31: #{tpu_custom_call.1} parent=27 // pred_region
        %s172 = smul.u32 16, %s18
        %p173 = scmp.lt.s32.totalorder %s17, 1
        %s174 = scalar_select %p173, %s17, 1
        %p175 = scmp.lt.s32.totalorder %s172, 15
        %s176 = scalar_select %p175, %s172, 15
        %s177 = smul.addr %s174, 16
        %s178 = sadd.s32 %s176, %s177
        %s179 = smul.addr %s178, 8
        %s180 = scalar_lea.vmem %s0, %s179
        %s181 = smul.u32 16, %s18
      $region32: #{tpu_custom_call.1} parent=27 // pred_fallthru
        _
    $region28: #{tpu_custom_call.1} parent=5 // pred_fallthru
      _
    %p182 = scmp.le.s32.totalorder 1, %s10
    %p183 = scmp.lt.s32.totalorder %s10, 3
    %p184 = pnand %p182, %p183
    %p185 = pneg %p184
    // Predicated region
    $region33: #{tpu_custom_call.1} parent=5 // pred_check
      _
    $region34: #{tpu_custom_call.1} parent=5 // pred_check_branch
      %187 = sbr.rel (%p184) target = $region36
    $region35: #{tpu_custom_call.1} parent=5 // pred_region
      %s188 = ssub.s32 %s10, 1
      %s189 = smul.u32 16, %s20
      %p190 = scmp.lt.s32.totalorder %s19, 1
      %s191 = scalar_select %p190, %s19, 1
      %p192 = scmp.lt.s32.totalorder %s189, 15
      %s193 = scalar_select %p192, %s189, 15
      %s194 = smul.addr %s191, 16
      %s195 = sadd.s32 %s193, %s194
      %s196 = smul.addr %s195, 8
      %s197 = scalar_lea.vmem %s0, %s196
      %p198 = pneg %p50
      %p199 = pneg %p47
      %p200 = pneg %p71
      %p201 = pneg %p68
      %p202 = pneg %p92
      %p203 = pneg %p89
      %p204 = pneg %p113
      %p205 = pneg %p110
      %p206 = pneg %p141
      %p207 = pneg %p138
      %s208 = smul.u32 8, %s20
      %p209 = scmp.lt.s32.totalorder %s19, 1
      %s210 = scalar_select %p209, %s19, 1
      %p211 = scmp.lt.s32.totalorder %s208, 7
      %s212 = scalar_select %p211, %s208, 7
      %s213 = smul.addr %s210, 8
      %s214 = sadd.s32 %s212, %s213
      %s215 = smul.addr %s214, 8
      %s216 = scalar_lea.vmem %s4, %s215
      %s217 = smul.u32 16, %s20
      %p218 = scmp.lt.s32.totalorder %s19, 1
      %s219 = scalar_select %p218, %s19, 1
      %p220 = scmp.lt.s32.totalorder %s217, 15
      %s221 = scalar_select %p220, %s217, 15
      %s222 = smul.addr %s219, 16
      %s223 = sadd.s32 %s221, %s222
      %s224 = smul.addr %s223, 8
      %s225 = scalar_lea.vmem %s0, %s224
      %s226 = smul.u32 16, %s20
      %s227 = smul.u32 8, %s20
      %p228 = scmp.lt.s32.totalorder %s19, 1
      %s229 = scalar_select %p228, %s19, 1
      %p230 = scmp.lt.s32.totalorder %s227, 7
      %s231 = scalar_select %p230, %s227, 7
      %s232 = smul.addr %s229, 8
      %s233 = sadd.s32 %s231, %s232
      %s234 = smul.addr %s233, 8
      %s235 = scalar_lea.vmem %s4, %s234
      %s236 = smul.u32 8, %s20
      %v237 = vld [vmem:[%s225] sm:$0xff]
      %v238 = vld [vmem:[%s225 + $0x8] sm:$0xff]
      %v239 = vld [vmem:[%s225 + $0x10] sm:$0xff]
      %v240 = vld [vmem:[%s225 + $0x18] sm:$0xff]
      %v241 = vld [vmem:[%s225 + $0x20] sm:$0xff]
      %v242 = vld [vmem:[%s225 + $0x28] sm:$0xff]
      %v243 = vld [vmem:[%s225 + $0x30] sm:$0xff]
      %v244 = vld [vmem:[%s225 + $0x38] sm:$0xff]
      %v245 = vld [vmem:[%s225 + $0x40] sm:$0xff]
      %v246 = vld [vmem:[%s225 + $0x48] sm:$0xff]
      %v247 = vld [vmem:[%s225 + $0x50] sm:$0xff]
      %v248 = vld [vmem:[%s225 + $0x58] sm:$0xff]
      %v249 = vld [vmem:[%s225 + $0x60] sm:$0xff]
      %v250 = vld [vmem:[%s225 + $0x68] sm:$0xff]
      %v251 = vld [vmem:[%s225 + $0x70] sm:$0xff]
      %v252 = vld [vmem:[%s225 + $0x78] sm:$0xff]
      %v253 = vld [vmem:[%s1] sm:$0x1]
      %v254 = vld [vmem:[%s2] sm:$0x1]
      %v256 = vlaneseq
      %v257 = vshrl.u32 %v256, 7
      %v258 = vsub.s32 0, %v257
      %v259 = vrot.slane %v253, %v258
      %v261 = vmul.f32 %v237, %v259
      %v262 = vmul.f32 %v239, %v259
      %v263 = vmul.f32 %v241, %v259
      %v264 = vmul.f32 %v243, %v259
      %v265 = vmul.f32 %v245, %v259
      %v266 = vmul.f32 %v247, %v259
      %v267 = vmul.f32 %v249, %v259
      %v268 = vmul.f32 %v251, %v259
      %v270 = vlaneseq
      %v271 = vshrl.u32 %v270, 7
      %v272 = vsub.s32 0, %v271
      %v273 = vrot.slane %v254, %v272
      %v275 = vadd.f32 %v261, %v273
      %v276 = vadd.f32 %v262, %v273
      %v277 = vadd.f32 %v263, %v273
      %v278 = vadd.f32 %v264, %v273
      %v279 = vadd.f32 %v265, %v273
      %v280 = vadd.f32 %v266, %v273
      %v281 = vadd.f32 %v267, %v273
      %v282 = vadd.f32 %v268, %v273
      %v283 = vmax.f32 %v275, 0.0
      %v284 = vmax.f32 %v276, 0.0
      %v285 = vmax.f32 %v277, 0.0
      %v286 = vmax.f32 %v278, 0.0
      %v287 = vmax.f32 %v279, 0.0
      %v288 = vmax.f32 %v280, 0.0
      %v289 = vmax.f32 %v281, 0.0
      %v290 = vmax.f32 %v282, 0.0
      %291 = vrot.lane.b32.xlu0 %v259, 4
      %v292 = vpop.permute.xlu0 %291
      %v294 = vmul.f32 %v237, %v292
      %v295 = vmul.f32 %v239, %v292
      %v296 = vmul.f32 %v241, %v292
      %v297 = vmul.f32 %v243, %v292
      %v298 = vmul.f32 %v245, %v292
      %v299 = vmul.f32 %v247, %v292
      %v300 = vmul.f32 %v249, %v292
      %v301 = vmul.f32 %v251, %v292
      %302 = vrot.lane.b32.xlu0 %v273, 4
      %v303 = vpop.permute.xlu0 %302
      %v305 = vadd.f32 %v294, %v303
      %v306 = vadd.f32 %v295, %v303
      %v307 = vadd.f32 %v296, %v303
      %v308 = vadd.f32 %v297, %v303
      %v309 = vadd.f32 %v298, %v303
      %v310 = vadd.f32 %v299, %v303
      %v311 = vadd.f32 %v300, %v303
      %v312 = vadd.f32 %v301, %v303
      %v313 = vmax.f32 %v305, 0.0
      %v314 = vmax.f32 %v306, 0.0
      %v315 = vmax.f32 %v307, 0.0
      %v316 = vmax.f32 %v308, 0.0
      %v317 = vmax.f32 %v309, 0.0
      %v318 = vmax.f32 %v310, 0.0
      %v319 = vmax.f32 %v311, 0.0
      %v320 = vmax.f32 %v312, 0.0
      %329 = vrot.lane.b32.xlu0 %v313, 124
      %v330 = vpop.permute.xlu0 %329
      %331 = vrot.lane.b32.xlu0 %v314, 124
      %v332 = vpop.permute.xlu0 %331
      %333 = vrot.lane.b32.xlu0 %v315, 124
      %v334 = vpop.permute.xlu0 %333
      %335 = vrot.lane.b32.xlu0 %v316, 124
      %v336 = vpop.permute.xlu0 %335
      %337 = vrot.lane.b32.xlu0 %v317, 124
      %v338 = vpop.permute.xlu0 %337
      %339 = vrot.lane.b32.xlu0 %v318, 124
      %v340 = vpop.permute.xlu0 %339
      %341 = vrot.lane.b32.xlu0 %v319, 124
      %v342 = vpop.permute.xlu0 %341
      %343 = vrot.lane.b32.xlu0 %v320, 124
      %v344 = vpop.permute.xlu0 %343
      %v353 = vadd.f32 %v283, %v330
      %v354 = vadd.f32 %v284, %v332
      %v355 = vadd.f32 %v285, %v334
      %v356 = vadd.f32 %v286, %v336
      %v357 = vadd.f32 %v287, %v338
      %v358 = vadd.f32 %v288, %v340
      %v359 = vadd.f32 %v289, %v342
      %v360 = vadd.f32 %v290, %v344
      %v361 = vmul.f32 %v238, %v259
      %v362 = vmul.f32 %v240, %v259
      %v363 = vmul.f32 %v242, %v259
      %v364 = vmul.f32 %v244, %v259
      %v365 = vmul.f32 %v246, %v259
      %v366 = vmul.f32 %v248, %v259
      %v367 = vmul.f32 %v250, %v259
      %v368 = vmul.f32 %v252, %v259
      %v369 = vadd.f32 %v361, %v273
      %v370 = vadd.f32 %v362, %v273
      %v371 = vadd.f32 %v363, %v273
      %v372 = vadd.f32 %v364, %v273
      %v373 = vadd.f32 %v365, %v273
      %v374 = vadd.f32 %v366, %v273
      %v375 = vadd.f32 %v367, %v273
      %v376 = vadd.f32 %v368, %v273
      %v377 = vmax.f32 %v369, 0.0
      %v378 = vmax.f32 %v370, 0.0
      %v379 = vmax.f32 %v371, 0.0
      %v380 = vmax.f32 %v372, 0.0
      %v381 = vmax.f32 %v373, 0.0
      %v382 = vmax.f32 %v374, 0.0
      %v383 = vmax.f32 %v375, 0.0
      %v384 = vmax.f32 %v376, 0.0
      %v385 = vadd.f32 %v353, %v377
      %v386 = vadd.f32 %v354, %v378
      %v387 = vadd.f32 %v355, %v379
      %v388 = vadd.f32 %v356, %v380
      %v389 = vadd.f32 %v357, %v381
      %v390 = vadd.f32 %v358, %v382
      %v391 = vadd.f32 %v359, %v383
      %v392 = vadd.f32 %v360, %v384
      %v393 = vmul.f32 %v238, %v292
      %v394 = vmul.f32 %v240, %v292
      %v395 = vmul.f32 %v242, %v292
      %v396 = vmul.f32 %v244, %v292
      %v397 = vmul.f32 %v246, %v292
      %v398 = vmul.f32 %v248, %v292
      %v399 = vmul.f32 %v250, %v292
      %v400 = vmul.f32 %v252, %v292
      %v401 = vadd.f32 %v393, %v303
      %v402 = vadd.f32 %v394, %v303
      %v403 = vadd.f32 %v395, %v303
      %v404 = vadd.f32 %v396, %v303
      %v405 = vadd.f32 %v397, %v303
      %v406 = vadd.f32 %v398, %v303
      %v407 = vadd.f32 %v399, %v303
      %v408 = vadd.f32 %v400, %v303
      %v409 = vmax.f32 %v401, 0.0
      %v410 = vmax.f32 %v402, 0.0
      %v411 = vmax.f32 %v403, 0.0
      %v412 = vmax.f32 %v404, 0.0
      %v413 = vmax.f32 %v405, 0.0
      %v414 = vmax.f32 %v406, 0.0
      %v415 = vmax.f32 %v407, 0.0
      %v416 = vmax.f32 %v408, 0.0
      %425 = vrot.lane.b32.xlu0 %v409, 124
      %v426 = vpop.permute.xlu0 %425
      %427 = vrot.lane.b32.xlu0 %v410, 124
      %v428 = vpop.permute.xlu0 %427
      %429 = vrot.lane.b32.xlu0 %v411, 124
      %v430 = vpop.permute.xlu0 %429
      %431 = vrot.lane.b32.xlu0 %v412, 124
      %v432 = vpop.permute.xlu0 %431
      %433 = vrot.lane.b32.xlu0 %v413, 124
      %v434 = vpop.permute.xlu0 %433
      %435 = vrot.lane.b32.xlu0 %v414, 124
      %v436 = vpop.permute.xlu0 %435
      %437 = vrot.lane.b32.xlu0 %v415, 124
      %v438 = vpop.permute.xlu0 %437
      %439 = vrot.lane.b32.xlu0 %v416, 124
      %v440 = vpop.permute.xlu0 %439
      %v449 = vadd.f32 %v385, %v426
      %v450 = vadd.f32 %v386, %v428
      %v451 = vadd.f32 %v387, %v430
      %v452 = vadd.f32 %v388, %v432
      %v453 = vadd.f32 %v389, %v434
      %v454 = vadd.f32 %v390, %v436
      %v455 = vadd.f32 %v391, %v438
      %v456 = vadd.f32 %v392, %v440
      %v457 = vld [vmem:[%s3] sm:$0xf]
      %vm458 = vcmask 31744
      %v460 = vsel %vm458, %v449, 0
      %v463 = vsel %vm458, %v450, 0
      %v466 = vsel %vm458, %v451, 0
      %v469 = vsel %vm458, %v452, 0
      %v472 = vsel %vm458, %v453, 0
      %v475 = vsel %vm458, %v454, 0
      %v478 = vsel %vm458, %v455, 0
      %v481 = vsel %vm458, %v456, 0
      %vm483 = vcmask 1043456
      %v485 = vsel %vm483, %v457, 0
      %487 = vmatprep.subr.mxu0 0.0
      %488 = vmatpush1.msra.mxu0 0.0
      %489 = vmatprep.subr.mxu0 0.0
      %490 = vmatpush1.msra.mxu0 0.0
      %491 = vmatprep.subr.mxu0 0.0
      %492 = vmatpush1.msra.mxu0 0.0
      %493 = vmatprep.subr.mxu0 0.0
      %494 = vmatpush1.msra.mxu0 0.0
      %495 = vmatprep.subr.mxu0 0.0
      %496 = vmatpush1.msra.mxu0 0.0
      %497 = vmatprep.subr.mxu0 0.0
      %498 = vmatpush1.msra.mxu0 0.0
      %499 = vmatprep.subr.mxu0 0.0
      %500 = vmatpush1.msra.mxu0 0.0
      %501 = vmatprep.subr.mxu0 0.0
      %502 = vmatpush1.msra.mxu0 0.0
      %503 = vmatprep.subr.mxu0 0.0
      %504 = vmatpush1.msra.mxu0 0.0
      %505 = vmatprep.subr.mxu0 0.0
      %506 = vmatpush1.msra.mxu0 0.0
      %507 = vmatprep.subr.mxu0 0.0
      %508 = vmatpush1.msra.mxu0 0.0
      %509 = vmatprep.subr.mxu0 0.0
      %510 = vmatpush1.msra.mxu0 0.0
      %511 = vmatprep.subr.mxu0 0.0
      %512 = vmatpush1.msra.mxu0 0.0
      %513 = vmatprep.subr.mxu0 0.0
      %514 = vmatpush1.msra.mxu0 0.0
      %515 = vmatprep.subr.mxu0 0.0
      %516 = vmatpush1.msra.mxu0 0.0
      %517 = vmatprep.subr.mxu0 0.0
      %518 = vmatpush1.msra.mxu0 %v485
      %519 = vmatprep.subr.mxu0 0.0
      %520 = vmatpush2.msra.mxu0 0.0
      %521 = vmatprep.subr.mxu0 0.0
      %522 = vmatpush2.msra.mxu0 0.0
      %523 = vmatprep.subr.mxu0 0.0
      %524 = vmatpush2.msra.mxu0 0.0
      %525 = vmatprep.subr.mxu0 0.0
      %526 = vmatpush2.msra.mxu0 0.0
      %527 = vmatprep.subr.mxu0 0.0
      %528 = vmatpush2.msra.mxu0 0.0
      %529 = vmatprep.subr.mxu0 0.0
      %530 = vmatpush2.msra.mxu0 0.0
      %531 = vmatprep.subr.mxu0 0.0
      %532 = vmatpush2.msra.mxu0 0.0
      %533 = vmatprep.subr.mxu0 0.0
      %534 = vmatpush2.msra.mxu0 0.0
      %535 = vmatprep.subr.mxu0 0.0
      %536 = vmatpush2.msra.mxu0 0.0
      %537 = vmatprep.subr.mxu0 0.0
      %538 = vmatpush2.msra.mxu0 0.0
      %539 = vmatprep.subr.mxu0 0.0
      %540 = vmatpush2.msra.mxu0 0.0
      %541 = vmatprep.subr.mxu0 0.0
      %542 = vmatpush2.msra.mxu0 0.0
      %543 = vmatprep.subr.mxu0 0.0
      %544 = vmatpush2.msra.mxu0 0.0
      %545 = vmatprep.subr.mxu0 0.0
      %546 = vmatpush2.msra.mxu0 0.0
      %547 = vmatprep.subr.mxu0 0.0
      %548 = vmatpush2.msra.mxu0 0.0
      %549 = vmatprep.subr.mxu0 0.0
      %550 = vmatpush2.msra.mxu0 0.0
      %551 = vmatprep.mubr.f32.mxu0 0.0
      %552 = vmatmul.mubr.f32.gmra.mxu0 %v460
      %v553 = vpop.f32.mrf.mxu0
      %v554 = vadd.f32 0.0, %v553
      %v555 = vpop.f32.mrf.mxu0
      %556 = vmatprep.mubr.f32.mxu0 0.0
      %557 = vmatmul.mubr.f32.gmra.mxu0 %v463
      %v558 = vpop.f32.mrf.mxu0
      %v559 = vadd.f32 0.0, %v558
      %v560 = vpop.f32.mrf.mxu0
      %561 = vmatprep.mubr.f32.mxu0 0.0
      %562 = vmatmul.mubr.f32.gmra.mxu0 %v466
      %v563 = vpop.f32.mrf.mxu0
      %v564 = vadd.f32 0.0, %v563
      %v565 = vpop.f32.mrf.mxu0
      %566 = vmatprep.mubr.f32.mxu0 0.0
      %567 = vmatmul.mubr.f32.gmra.mxu0 %v469
      %v568 = vpop.f32.mrf.mxu0
      %v569 = vadd.f32 0.0, %v568
      %v570 = vpop.f32.mrf.mxu0
      %571 = vmatprep.mubr.f32.mxu0 0.0
      %572 = vmatmul.mubr.f32.gmra.mxu0 %v472
      %v573 = vpop.f32.mrf.mxu0
      %v574 = vadd.f32 0.0, %v573
      %v575 = vpop.f32.mrf.mxu0
      %576 = vmatprep.mubr.f32.mxu0 0.0
      %577 = vmatmul.mubr.f32.gmra.mxu0 %v475
      %v578 = vpop.f32.mrf.mxu0
      %v579 = vadd.f32 0.0, %v578
      %v580 = vpop.f32.mrf.mxu0
      %581 = vmatprep.mubr.f32.mxu0 0.0
      %582 = vmatmul.mubr.f32.gmra.mxu0 %v478
      %v583 = vpop.f32.mrf.mxu0
      %v584 = vadd.f32 0.0, %v583
      %v585 = vpop.f32.mrf.mxu0
      %586 = vmatprep.mubr.f32.mxu0 0.0
      %587 = vmatmul.mubr.f32.gmra.mxu0 %v481
      %v588 = vpop.f32.mrf.mxu0
      %v589 = vadd.f32 0.0, %v588
      %v590 = vpop.f32.mrf.mxu0
      %591 = vdwg.mxu0
      %vm592 = vcmask 15360
      %593 = vst.msk [vmem:[%s235] sm:$0xff] %vm592, %v554
      %594 = vst.msk [vmem:[%s235 + $0x8] sm:$0xff] %vm592, %v559
      %595 = vst.msk [vmem:[%s235 + $0x10] sm:$0xff] %vm592, %v564
      %596 = vst.msk [vmem:[%s235 + $0x18] sm:$0xff] %vm592, %v569
      %597 = vst.msk [vmem:[%s235 + $0x20] sm:$0xff] %vm592, %v574
      %598 = vst.msk [vmem:[%s235 + $0x28] sm:$0xff] %vm592, %v579
      %599 = vst.msk [vmem:[%s235 + $0x30] sm:$0xff] %vm592, %v584
      %600 = vst.msk [vmem:[%s235 + $0x38] sm:$0xff] %vm592, %v589
      %s601 = smul.u32 8, %s20
      %p602 = scmp.lt.s32.totalorder %s19, 1
      %s603 = scalar_select %p602, %s19, 1
      %p604 = scmp.lt.s32.totalorder %s601, 7
      %s605 = scalar_select %p604, %s601, 7
      %s606 = smul.addr %s603, 8
      %s607 = sadd.s32 %s605, %s606
      %s608 = smul.addr %s607, 8
      %s609 = scalar_lea.vmem %s4, %s608
      // Predicated region
      $region37: #{tpu_custom_call.1} parent=35 // pred_check
        %p610 = pneg %p138
      $region38: #{tpu_custom_call.1} parent=35 // pred_check_branch
        %612 = sbr.rel (%p610) target = $region40
      $region39: #{tpu_custom_call.1} parent=35 // pred_region
        %s613 = smul.u32 8, %s20
      $region40: #{tpu_custom_call.1} parent=35 // pred_fallthru
        _
    $region36: #{tpu_custom_call.1} parent=5 // pred_fallthru
      _
    %p614 = scmp.le.s32.totalorder 2, %s10
    // Predicated region
    $region41: #{tpu_custom_call.1} parent=5 // pred_check
      %p615 = pneg %p614
    $region42: #{tpu_custom_call.1} parent=5 // pred_check_branch
      %617 = sbr.rel (%p615) target = $region44
    $region43: #{tpu_custom_call.1} parent=5 // pred_region
      %s618 = ssub.s32 %s10, 2
      // Predicated region
      $region45: #{tpu_custom_call.1} parent=43 // pred_check
        %p619 = pneg %p144
      $region46: #{tpu_custom_call.1} parent=43 // pred_check_branch
        %621 = sbr.rel (%p619) target = $region48
      $region47: #{tpu_custom_call.1} parent=43 // pred_region
        %s622 = smul.u32 8, %s22
        %p623 = scmp.lt.s32.totalorder %s21, 1
        %s624 = scalar_select %p623, %s21, 1
        %p625 = scmp.lt.s32.totalorder %s622, 7
        %s626 = scalar_select %p625, %s622, 7
        %s627 = smul.addr %s624, 8
        %s628 = sadd.s32 %s626, %s627
        %s629 = smul.addr %s628, 8
        %s630 = scalar_lea.vmem %s4, %s629
      $region48: #{tpu_custom_call.1} parent=43 // pred_fallthru
        _
    $region44: #{tpu_custom_call.1} parent=5 // pred_fallthru
      _
  $region6: #{tpu_custom_call.1} parent=0 // loop_footer
    %s14 = sadd.s32 1, %s10
  $region7: #{tpu_custom_call.1} parent=0 // loop_footer_branch
    %9 = sbr.rel target = $region3
  $region8: #{tpu_custom_call.1} parent=0 // loop_exit
    _

</llo_original>
